<compile_context>
chip_gen: v6e
topology: v6e:2x2x1
jax: 0.10.0
libtpu: 0.0.40
codegen_flags: <defaults>
</compile_context>

<pallas_src>
import jax
import jax.numpy as jnp
from jax.experimental import pallas as pl
from jax.experimental.pallas import tpu as pltpu

LANES = 128
ROW_TILE = 2048  # (2048, 128) f32 block = 1 MiB; in+out double-buffered = 4 MiB (safe on v5e/v6e/v7x)


def _gaussian_act_kernel(c_ref, x_ref, o_ref):
    # c_ref: (1, 1) scalar in SMEM holding c = -1 / (2 * a^2)
    # x_ref / o_ref: (block_rows, 128) tiles in VMEM, original dtype
    c = c_ref[0, 0]
    x = x_ref[...].astype(jnp.float32)
    o_ref[...] = jnp.exp((x * x) * c).astype(o_ref.dtype)


def gaussian_activation(x: jax.Array, a: jax.Array) -> jax.Array:
    """x: any shape (e.g. NCHW), a: shape (1,) scalar parameter. Returns same shape/dtype as x."""
    orig_shape = x.shape
    dtype = x.dtype
    n = x.size
    itemsize = jnp.dtype(dtype).itemsize

    # Precompute the scalar coefficient once (tiny XLA scalar op): c = -1 / (2 a^2)
    a32 = a.reshape(()).astype(jnp.float32)
    c = (-1.0 / (2.0 * a32 * a32)).reshape(1, 1)

    # Flatten to a lane-dense 2-D slab. Only pad when numel isn't lane-aligned.
    x_flat = jnp.ravel(x)
    rem = n % LANES
    if rem != 0:
        x_flat = jnp.pad(x_flat, (0, LANES - rem))
    rows = x_flat.size // LANES
    x2d = x_flat.reshape(rows, LANES)

    # Block sizing: big tiles for large inputs; full-array block (no divisibility
    # requirement) when the whole slab is smaller than one tile. ROW_TILE=2048 is a
    # multiple of the sublane packing for f32 (8), bf16 (16), and int8 (32).
    block_rows = rows if rows <= ROW_TILE else ROW_TILE
    grid = (pl.cdiv(rows, block_rows),)

    out2d = pl.pallas_call(
        _gaussian_act_kernel,
        out_shape=jax.ShapeDtypeStruct((rows, LANES), dtype),
        grid_spec=pl.GridSpec(
            grid=grid,
            in_specs=[
                pl.BlockSpec(memory_space=pltpu.SMEM),             # scalar c
                pl.BlockSpec((block_rows, LANES), lambda i: (i, 0)),
            ],
            out_specs=pl.BlockSpec((block_rows, LANES), lambda i: (i, 0)),
        ),
        compiler_params=pltpu.CompilerParams(
            dimension_semantics=("parallel",),
        ),
        cost_estimate=pl.CostEstimate(
            flops=2 * n, transcendentals=n, bytes_accessed=2 * n * itemsize
        ),
    )(c, x2d)

    out_flat = out2d.reshape(-1)
    if rem != 0:
        out_flat = out_flat[:n]
    return out_flat.reshape(orig_shape)


if __name__ == "__main__":
    key = jax.random.PRNGKey(0)
    # matches nn.Parameter(a * torch.ones(1)) with a=1.0 (use a != 1 to exercise the scalar path)
    a_param = jnp.full((1,), 0.7, dtype=jnp.float32)

    # f32 NCHW input (lane-aligned: 2*4*16*16 = 2048 elements)
    x = jax.random.normal(key, (2, 4, 16, 16), dtype=jnp.float32)
    out = jax.block_until_ready(gaussian_activation(x, a_param))
    ref = jnp.exp(-x ** 2 / (2.0 * a_param[0] ** 2))
    assert out.shape == x.shape and out.dtype == x.dtype
    assert jnp.allclose(out, ref, atol=1e-6, rtol=1e-6)

    # ragged (non-lane-aligned) size to exercise the padding path
    x_odd = jax.random.normal(jax.random.PRNGKey(1), (3, 5, 7), dtype=jnp.float32)
    out_odd = jax.block_until_ready(gaussian_activation(x_odd, a_param))
    ref_odd = jnp.exp(-x_odd ** 2 / (2.0 * a_param[0] ** 2))
    assert jnp.allclose(out_odd, ref_odd, atol=1e-6, rtol=1e-6)

    # bf16 I/O path (kernel keeps HBM traffic in bf16, squares in f32)
    x_bf16 = x.astype(jnp.bfloat16)
    out_bf16 = jax.block_until_ready(gaussian_activation(x_bf16, a_param))
    ref_bf16 = jnp.exp(-(x_bf16.astype(jnp.float32)) ** 2 / (2.0 * a_param[0] ** 2))
    assert out_bf16.dtype == jnp.bfloat16
    assert jnp.allclose(out_bf16.astype(jnp.float32), ref_bf16, atol=2e-2, rtol=2e-2)

    print("KERNEL_OK")
</pallas_src>

<mosaic_0001>
module attributes {stable_mosaic.version = 11 : i64} {
  func.func @_gaussian_act_kernel(%arg0: i32, %arg1: memref<1x1xf32, #tpu.memory_space<smem>>, %arg2: memref<16x128xf32, #tpu.memory_space<vmem>>, %arg3: memref<16x128xf32, #tpu.memory_space<vmem>>) attributes {dimension_semantics = [#tpu.dimension_semantics<parallel>], iteration_bounds = array<i64: 1>, scalar_prefetch = 0 : i64, scratch_operands = 0 : i64, tpu.core_type = #tpu.core_type<tc>, window_params = [{transform_indices = @transform_0, window_bounds = array<i64: 1, 1>}, {transform_indices = @transform_1, window_bounds = array<i64: 16, 128>}, {transform_indices = @transform_2, window_bounds = array<i64: 16, 128>}]} {
    %c0 = arith.constant 0 : index
    %c0_0 = arith.constant 0 : index
    %0 = memref.load %arg1[%c0, %c0_0] : memref<1x1xf32, #tpu.memory_space<smem>>
    %c0_1 = arith.constant 0 : index
    %c0_2 = arith.constant 0 : index
    %1 = vector.load %arg2[%c0_1, %c0_2] : memref<16x128xf32, #tpu.memory_space<vmem>>, vector<16x128xf32>
    %2 = arith.mulf %1, %1 : vector<16x128xf32>
    %3 = vector.broadcast %0 : f32 to vector<16x128xf32>
    %4 = arith.mulf %2, %3 : vector<16x128xf32>
    %5 = math.exp %4 : vector<16x128xf32>
    %c0_3 = arith.constant 0 : index
    %c0_4 = arith.constant 0 : index
    %6 = vector.load %arg3[%c0_3, %c0_4] : memref<16x128xf32, #tpu.memory_space<vmem>>, vector<16x128xf32>
    tpu.vector_store %arg3[%c0_3, %c0_4], %5 {strides = array<i32>} : memref<16x128xf32, #tpu.memory_space<vmem>>, vector<16x128xf32>,
    return
  }
  func.func @transform_0(%arg0: i32) -> (i32, i32) {
    %c0_i32 = arith.constant 0 : i32
    %c0_i32_0 = arith.constant 0 : i32
    %c0_i32_1 = arith.constant 0 : i32
    return %c0_i32, %c0_i32_0 : i32, i32
  }
  func.func @transform_1(%arg0: i32) -> (i32, i32) {
    %c0_i32 = arith.constant 0 : i32
    %c0_i32_0 = arith.constant 0 : i32
    return %arg0, %c0_i32 : i32, i32
  }
  func.func @transform_2(%arg0: i32) -> (i32, i32) {
    %c0_i32 = arith.constant 0 : i32
    %c0_i32_0 = arith.constant 0 : i32
    return %arg0, %c0_i32 : i32, i32
  }
}

</mosaic_0001>

<llo_original>
// kernel: tpu_custom_call.1
$region0: #{tpu_custom_call.1}
  #allocation0 [shape = 'u32[]', space=smem, size = 0x4, offset = 0x4, fixed_abs, tag = 'smem constant byte address 0x4 - core index']
  #allocation1 [shape = 'u32[144,128]{1,0:T(1,128)}', space=vmem, size = 0x12000, scoped, tag = 'internal scratch']
  #allocation2 [shape = 'f32[1,1]{1,0:T(1,128)S(6)}', space=smem, size = 0x200, scoped, tag = 'scoped memory for tpu_custom_call.1']
  %s0 = inlined_call_operand.<no memory space> [shape: f32[1,1], index: 0, kind: input, shape index: {}]
  %s1 = inlined_call_operand.hbm [shape: f32[16,128], index: 1, kind: input, shape index: {}]
  %s2 = inlined_call_operand.hbm [shape: f32[16,128], index: 2, kind: output, shape index: {}]
  %s3 = sld [smem:[#allocation0]]
  $region22: #{tpu_custom_call.1} parent=0
    _
  %s5 = ssub.s32 1, %s3
  %s6 = scalar_select 0, %s5, %s3
  %7 = sst [smem:[#allocation2]] %s0
  $region1: #{tpu_custom_call.1} parent=0
    #allocation3 [shape = 'u8[8192]{0}', space=vmem, size = 0x2000, scoped, tag = 'input window, operand 1, single buffered']
    #allocation4 [shape = 's32[1]{0}', space=sflag, size = 0x4, scoped, tag = 'scoped memory for tpu_custom_call.1']
    #allocation5 [shape = 's32[1]{0}', space=sflag, size = 0x4, scoped, tag = 'scoped memory for tpu_custom_call.1']
    #allocation6 [shape = 'u8[8192]{0}', space=vmem, size = 0x2000, scoped, tag = 'output window, operand 0, single buffered']
    %8 = vsyncpa [#allocation4], 0
    %9 = vsyncpa [#allocation5], 0
    // Predicated region
    $region2: #{tpu_custom_call.1} parent=1 // pred_check
      _
    $region3: #{tpu_custom_call.1} parent=1 // pred_check_branch
      %11 = sbr.rel (0) target = $region5
    $region4: #{tpu_custom_call.1} parent=1 // pred_region
      _
    $region5: #{tpu_custom_call.1} parent=1 // pred_fallthru
      _
    // Predicated region
    $region6: #{tpu_custom_call.1} parent=1 // pred_check
      _
    $region7: #{tpu_custom_call.1} parent=1 // pred_check_branch
      %13 = sbr.rel (0) target = $region9
    $region8: #{tpu_custom_call.1} parent=1 // pred_region
      %s15 = ssub.s32 256, 256
      %16 = vsyncadd [#allocation4], %s15
      %s17 = sshll.u32 [#allocation3], 4
      %s18 = int_to_ptr.vmem [resolvable:$true] %s17
      %23 = dma.hbm_to_vmem [thread:$0]  %s1, 256, %s18, [#allocation4], 128, 128, 8
    $region9: #{tpu_custom_call.1} parent=1 // pred_fallthru
      _
    // Predicated region
    $region10: #{tpu_custom_call.1} parent=1 // pred_check
      _
    $region11: #{tpu_custom_call.1} parent=1 // pred_check_branch
      %25 = sbr.rel (0) target = $region13
    $region12: #{tpu_custom_call.1} parent=1 // pred_region
      %26 = dma.done [#allocation4], 256
    $region13: #{tpu_custom_call.1} parent=1 // pred_fallthru
      _
    %s27 = sld [smem:[#allocation2]]
    %v28 = vld [vmem:[#allocation3] sm:$0xff]
    %v29 = vld [vmem:[#allocation3 + $0x8] sm:$0xff]
    %v30 = vmul.f32 %v28, %v28
    %v31 = vmul.f32 %v29, %v29
    %v32 = vstv %s27
    %v33 = vmul.f32 %v30, %v32
    %v34 = vmul.f32 %v31, %v32
    %v35 = vmul.f32 %v33, 1.442695
    %v36 = vpow.pop %v35
    %v37 = vmul.f32 %v34, 1.442695
    %v38 = vpow.pop %v37
    %39 = vst [vmem:[#allocation6] sm:$0xff] %v36
    %40 = vst [vmem:[#allocation6 + $0x8] sm:$0xff] %v38
    // Predicated region
    $region14: #{tpu_custom_call.1} parent=1 // pred_check
      _
    $region15: #{tpu_custom_call.1} parent=1 // pred_check_branch
      %42 = sbr.rel (0) target = $region17
    $region16: #{tpu_custom_call.1} parent=1 // pred_region
      %s44 = ssub.s32 256, 256
      %45 = vsyncadd [#allocation5], %s44
      %s46 = sshll.u32 [#allocation6], 4
      %s47 = int_to_ptr.vmem [resolvable:$true] %s46
      %52 = dma.vmem_to_hbm [thread:$0]  %s47, 256, %s2, [#allocation5], 128, 128, 8
    $region17: #{tpu_custom_call.1} parent=1 // pred_fallthru
      _
    // Predicated region
    $region18: #{tpu_custom_call.1} parent=1 // pred_check
      _
    $region19: #{tpu_custom_call.1} parent=1 // pred_check_branch
      %54 = sbr.rel (0) target = $region21
    $region20: #{tpu_custom_call.1} parent=1 // pred_region
      %55 = dma.done [#allocation5], 256
    $region21: #{tpu_custom_call.1} parent=1 // pred_fallthru
      _
    %56 = vsyncpa [#allocation4], 1
    %57 = vsyncpa [#allocation5], 1

</llo_original>
